<compile_context>
chip_gen: v7x
topology: tpu7x:2x2x1
jax: 0.10.0
libtpu: 0.0.40
codegen_flags: <defaults>
</compile_context>

<pallas_src>
import jax
import jax.numpy as jnp
from jax.experimental import pallas as pl
from jax.experimental.pallas import tpu as pltpu


# --------------------------------------------------------------------------
# Kernel: fused 3-layer MLP (Linear -> ReLU -> Linear -> ReLU -> Linear)
# --------------------------------------------------------------------------
def critic_kernel(s_ref, a_ref, w1s_ref, w1a_ref, b1_ref,
                  w2_ref, b2_ref, w3_ref, b3_ref, out_ref):
    # Layer 1: (bm,S)@(S,512) + (bm,A)@(A,512) + b1, ReLU  (replaces concat).
    h1 = jnp.dot(s_ref[...], w1s_ref[...], preferred_element_type=jnp.float32)
    h1 = h1 + jnp.dot(a_ref[...], w1a_ref[...],
                      preferred_element_type=jnp.float32)
    h1 = jnp.maximum(h1 + b1_ref[...], 0.0)                      # (bm, 512)

    # Layer 2: (bm,512)@(512,256) + b2, ReLU.
    h2 = jnp.dot(h1, w2_ref[...], preferred_element_type=jnp.float32)
    h2 = jnp.maximum(h2 + b2_ref[...], 0.0)                      # (bm, 256)

    # Layer 3 (N=1): contract w3_row (1,256) against h2's feature axis so the
    # result comes out lane-dense as (1, bm) -- batch on the lane axis.
    q = jax.lax.dot_general(w3_ref[...], h2,
                            dimension_numbers=(((1,), (1,)), ((), ())),
                            preferred_element_type=jnp.float32)  # (1, bm)
    out_ref[...] = (q + b3_ref[...]).astype(out_ref.dtype)


# --------------------------------------------------------------------------
# Wrapper
# --------------------------------------------------------------------------
def critic_forward(state, action, params, *, max_block_b=512, tile_b=256):
    """Pallas-backed Critic forward. state:(B,S), action:(B,A) -> (B,1)."""
    w1_s, w1_a, b1, w2, b2, w3_row, b3 = params
    B, S = state.shape
    A = action.shape[1]
    H1 = w2.shape[0]
    H2 = w2.shape[1]
    assert tile_b % 8 == 0

    # Block selection: single grid step for small batches, 256-row tiles
    # (with batch padding) for large ones.
    if B <= max_block_b:
        block_b = B
        B_pad = B
    else:
        block_b = tile_b
        B_pad = pl.cdiv(B, block_b) * block_b

    if B_pad != B:
        pad = B_pad - B
        state = jnp.pad(state, ((0, pad), (0, 0)))
        action = jnp.pad(action, ((0, pad), (0, 0)))

    grid = (B_pad // block_b,)

    flops = 2 * B_pad * ((S + A) * H1 + H1 * H2 + H2)
    bytes_accessed = 4 * (B_pad * (S + A + 1)
                          + (S + A) * H1 + H1 + H1 * H2 + H2 + H2 + 1)
    cost = pl.CostEstimate(flops=flops, transcendentals=0,
                           bytes_accessed=bytes_accessed)

    out = pl.pallas_call(
        critic_kernel,
        out_shape=jax.ShapeDtypeStruct((1, B_pad), jnp.float32),
        grid_spec=pltpu.PrefetchScalarGridSpec(
            num_scalar_prefetch=0,
            grid=grid,
            in_specs=[
                # activations: tiled over the batch
                pl.BlockSpec((block_b, S), lambda i: (i, 0)),
                pl.BlockSpec((block_b, A), lambda i: (i, 0)),
                # weights / biases: constant index_map -> VMEM-resident
                pl.BlockSpec((S, H1), lambda i: (0, 0)),
                pl.BlockSpec((A, H1), lambda i: (0, 0)),
                pl.BlockSpec((1, H1), lambda i: (0, 0)),
                pl.BlockSpec((H1, H2), lambda i: (0, 0)),
                pl.BlockSpec((1, H2), lambda i: (0, 0)),
                pl.BlockSpec((1, H2), lambda i: (0, 0)),
                pl.BlockSpec((1, 1), lambda i: (0, 0)),
            ],
            # lane-dense output: batch on the lane axis
            out_specs=pl.BlockSpec((1, block_b), lambda i: (0, i)),
        ),
        compiler_params=pltpu.CompilerParams(
            dimension_semantics=("parallel",)),
        cost_estimate=cost,
    )(state, action, w1_s, w1_a, b1, w2, b2, w3_row, b3)

    return out[0, :B].reshape(B, 1)


# --------------------------------------------------------------------------
# Deterministic parameter init (mirrors the torch module's shapes/ranges),
# stored in kernel-friendly layout: W1 pre-split into state/action halves,
# weights stored (in, out), W3 stored as a (1, 256) row.
# --------------------------------------------------------------------------
def init_critic_params(key, state_size, action_size,
                       fcs1_units=512, fc2_units=256):
    f_in = state_size + action_size
    k1, k2, k3, k4, k5, k6 = jax.random.split(key, 6)

    lim1 = 1.0 / (f_in ** 0.5)        # +/- 1/sqrt(fan_in)
    lim2 = 1.0 / (fcs1_units ** 0.5)

    w1 = jax.random.uniform(k1, (f_in, fcs1_units), jnp.float32, -lim1, lim1)
    b1 = jax.random.uniform(k2, (1, fcs1_units), jnp.float32, -lim1, lim1)
    w2 = jax.random.uniform(k3, (fcs1_units, fc2_units), jnp.float32, -lim2, lim2)
    b2 = jax.random.uniform(k4, (1, fc2_units), jnp.float32, -lim2, lim2)
    w3_row = jax.random.uniform(k5, (1, fc2_units), jnp.float32, -3e-3, 3e-3)
    b3 = jax.random.uniform(k6, (1, 1), jnp.float32, -3e-3, 3e-3)

    w1_s = w1[:state_size]            # (S, 512)
    w1_a = w1[state_size:]            # (A, 512)
    return (w1_s, w1_a, b1, w2, b2, w3_row, b3)


def critic_ref(state, action, params):
    """Plain-JAX reference for correctness checking."""
    w1_s, w1_a, b1, w2, b2, w3_row, b3 = params
    x = jax.nn.relu(state @ w1_s + action @ w1_a + b1)
    x = jax.nn.relu(x @ w2 + b2)
    return x @ w3_row.T + b3


if __name__ == "__main__":
    STATE_SIZE = 24
    ACTION_SIZE = 4
    BATCH = 16

    key = jax.random.PRNGKey(0)
    kp, ks, ka = jax.random.split(key, 3)

    params = init_critic_params(kp, STATE_SIZE, ACTION_SIZE)
    state = jax.random.normal(ks, (BATCH, STATE_SIZE), jnp.float32)
    action = jax.random.normal(ka, (BATCH, ACTION_SIZE), jnp.float32)

    # Small batch -> single grid step (block_b = B).
    q = jax.block_until_ready(critic_forward(state, action, params))
    q_ref = critic_ref(state, action, params)
    assert q.shape == (BATCH, 1)
    assert jnp.allclose(q, q_ref, atol=1e-4, rtol=1e-4), "mismatch (small batch)"

    # Also exercise the tiled + padded path (grid > 1, B not a block multiple).
    B2 = 600
    ks2, ka2 = jax.random.split(jax.random.PRNGKey(1))
    state2 = jax.random.normal(ks2, (B2, STATE_SIZE), jnp.float32)
    action2 = jax.random.normal(ka2, (B2, ACTION_SIZE), jnp.float32)
    q2 = jax.block_until_ready(critic_forward(state2, action2, params))
    q2_ref = critic_ref(state2, action2, params)
    assert q2.shape == (B2, 1)
    assert jnp.allclose(q2, q2_ref, atol=1e-4, rtol=1e-4), "mismatch (tiled batch)"

    print("KERNEL_OK")
</pallas_src>

<mosaic_0001>
module attributes {stable_mosaic.version = 11 : i64} {
  func.func @critic_kernel(%arg0: i32, %arg1: memref<16x24xf32, #tpu.memory_space<vmem>>, %arg2: memref<16x4xf32, #tpu.memory_space<vmem>>, %arg3: memref<24x512xf32, #tpu.memory_space<vmem>>, %arg4: memref<4x512xf32, #tpu.memory_space<vmem>>, %arg5: memref<1x512xf32, #tpu.memory_space<vmem>>, %arg6: memref<512x256xf32, #tpu.memory_space<vmem>>, %arg7: memref<1x256xf32, #tpu.memory_space<vmem>>, %arg8: memref<1x256xf32, #tpu.memory_space<vmem>>, %arg9: memref<1x1xf32, #tpu.memory_space<vmem>>, %arg10: memref<1x16xf32, #tpu.memory_space<vmem>>) attributes {dimension_semantics = [#tpu.dimension_semantics<parallel>], iteration_bounds = array<i64: 1>, scalar_prefetch = 0 : i64, scratch_operands = 0 : i64, tpu.core_type = #tpu.core_type<tc>, window_params = [{transform_indices = @transform_0, window_bounds = array<i64: 16, 24>}, {transform_indices = @transform_1, window_bounds = array<i64: 16, 4>}, {pipeline_mode = #tpu.pipeline_mode<synchronous>, transform_indices = @transform_2, window_bounds = array<i64: 24, 512>}, {pipeline_mode = #tpu.pipeline_mode<synchronous>, transform_indices = @transform_3, window_bounds = array<i64: 4, 512>}, {pipeline_mode = #tpu.pipeline_mode<synchronous>, transform_indices = @transform_4, window_bounds = array<i64: 1, 512>}, {pipeline_mode = #tpu.pipeline_mode<synchronous>, transform_indices = @transform_5, window_bounds = array<i64: 512, 256>}, {pipeline_mode = #tpu.pipeline_mode<synchronous>, transform_indices = @transform_6, window_bounds = array<i64: 1, 256>}, {pipeline_mode = #tpu.pipeline_mode<synchronous>, transform_indices = @transform_7, window_bounds = array<i64: 1, 256>}, {pipeline_mode = #tpu.pipeline_mode<synchronous>, transform_indices = @transform_8, window_bounds = array<i64: 1, 1>}, {transform_indices = @transform_9, window_bounds = array<i64: 1, 16>}]} {
    %c0 = arith.constant 0 : index
    %c0_0 = arith.constant 0 : index
    %0 = vector.load %arg1[%c0, %c0_0] : memref<16x24xf32, #tpu.memory_space<vmem>>, vector<16x24xf32>
    %c0_1 = arith.constant 0 : index
    %c0_2 = arith.constant 0 : index
    %1 = vector.load %arg3[%c0_1, %c0_2] : memref<24x512xf32, #tpu.memory_space<vmem>>, vector<24x512xf32>
    %cst = arith.constant dense<0.000000e+00> : vector<16x512xf32>
    %2 = tpu.matmul %0, %1, %cst {dimension_numbers = #tpu.dot_dimension_numbers<[1], [0], [0], [1], [0, 0, 1, 1], [], []>} : vector<16x24xf32>, vector<24x512xf32>, vector<16x512xf32> -> vector<16x512xf32>
    %c0_3 = arith.constant 0 : index
    %c0_4 = arith.constant 0 : index
    %3 = vector.load %arg2[%c0_3, %c0_4] : memref<16x4xf32, #tpu.memory_space<vmem>>, vector<16x4xf32>
    %c0_5 = arith.constant 0 : index
    %c0_6 = arith.constant 0 : index
    %4 = vector.load %arg4[%c0_5, %c0_6] : memref<4x512xf32, #tpu.memory_space<vmem>>, vector<4x512xf32>
    %cst_7 = arith.constant dense<0.000000e+00> : vector<16x512xf32>
    %5 = tpu.matmul %3, %4, %cst_7 {dimension_numbers = #tpu.dot_dimension_numbers<[1], [0], [0], [1], [0, 0, 1, 1], [], []>} : vector<16x4xf32>, vector<4x512xf32>, vector<16x512xf32> -> vector<16x512xf32>
    %6 = arith.addf %2, %5 : vector<16x512xf32>
    %c0_8 = arith.constant 0 : index
    %c0_9 = arith.constant 0 : index
    %7 = vector.load %arg5[%c0_8, %c0_9] : memref<1x512xf32, #tpu.memory_space<vmem>>, vector<1x512xf32>
    %8 = vector.broadcast %7 : vector<1x512xf32> to vector<16x512xf32>
    %9 = arith.addf %6, %8 : vector<16x512xf32>
    %cst_10 = arith.constant 0.000000e+00 : f32
    %10 = vector.broadcast %cst_10 : f32 to vector<16x512xf32>
    %11 = arith.maximumf %9, %10 : vector<16x512xf32>
    %c0_11 = arith.constant 0 : index
    %c0_12 = arith.constant 0 : index
    %12 = vector.load %arg6[%c0_11, %c0_12] : memref<512x256xf32, #tpu.memory_space<vmem>>, vector<512x256xf32>
    %cst_13 = arith.constant dense<0.000000e+00> : vector<16x256xf32>
    %13 = tpu.matmul %11, %12, %cst_13 {dimension_numbers = #tpu.dot_dimension_numbers<[1], [0], [0], [1], [0, 0, 1, 1], [], []>} : vector<16x512xf32>, vector<512x256xf32>, vector<16x256xf32> -> vector<16x256xf32>
    %c0_14 = arith.constant 0 : index
    %c0_15 = arith.constant 0 : index
    %14 = vector.load %arg7[%c0_14, %c0_15] : memref<1x256xf32, #tpu.memory_space<vmem>>, vector<1x256xf32>
    %15 = vector.broadcast %14 : vector<1x256xf32> to vector<16x256xf32>
    %16 = arith.addf %13, %15 : vector<16x256xf32>
    %cst_16 = arith.constant 0.000000e+00 : f32
    %17 = vector.broadcast %cst_16 : f32 to vector<16x256xf32>
    %18 = arith.maximumf %16, %17 : vector<16x256xf32>
    %c0_17 = arith.constant 0 : index
    %c0_18 = arith.constant 0 : index
    %19 = vector.load %arg8[%c0_17, %c0_18] : memref<1x256xf32, #tpu.memory_space<vmem>>, vector<1x256xf32>
    %cst_19 = arith.constant dense<0.000000e+00> : vector<1x16xf32>
    %20 = tpu.matmul %19, %18, %cst_19 {dimension_numbers = #tpu.dot_dimension_numbers<[1], [1], [0], [0], [0, 0, 1, 0], [], []>} : vector<1x256xf32>, vector<16x256xf32>, vector<1x16xf32> -> vector<1x16xf32>
    %c0_20 = arith.constant 0 : index
    %c0_21 = arith.constant 0 : index
    %21 = vector.load %arg9[%c0_20, %c0_21] : memref<1x1xf32, #tpu.memory_space<vmem>>, vector<1x1xf32>
    %22 = vector.broadcast %21 : vector<1x1xf32> to vector<1x16xf32>
    %23 = arith.addf %20, %22 : vector<1x16xf32>
    %c0_22 = arith.constant 0 : index
    %c0_23 = arith.constant 0 : index
    %24 = vector.load %arg10[%c0_22, %c0_23] : memref<1x16xf32, #tpu.memory_space<vmem>>, vector<1x16xf32>
    tpu.vector_store %arg10[%c0_22, %c0_23], %23 {strides = array<i32>} : memref<1x16xf32, #tpu.memory_space<vmem>>, vector<1x16xf32>,
    return
  }
  func.func @transform_0(%arg0: i32) -> (i32, i32) {
    %c0_i32 = arith.constant 0 : i32
    %c0_i32_0 = arith.constant 0 : i32
    return %arg0, %c0_i32 : i32, i32
  }
  func.func @transform_1(%arg0: i32) -> (i32, i32) {
    %c0_i32 = arith.constant 0 : i32
    %c0_i32_0 = arith.constant 0 : i32
    return %arg0, %c0_i32 : i32, i32
  }
  func.func @transform_2(%arg0: i32) -> (i32, i32) {
    %c0_i32 = arith.constant 0 : i32
    %c0_i32_0 = arith.constant 0 : i32
    %c0_i32_1 = arith.constant 0 : i32
    return %c0_i32, %c0_i32_0 : i32, i32
  }
  func.func @transform_3(%arg0: i32) -> (i32, i32) {
    %c0_i32 = arith.constant 0 : i32
    %c0_i32_0 = arith.constant 0 : i32
    %c0_i32_1 = arith.constant 0 : i32
    return %c0_i32, %c0_i32_0 : i32, i32
  }
  func.func @transform_4(%arg0: i32) -> (i32, i32) {
    %c0_i32 = arith.constant 0 : i32
    %c0_i32_0 = arith.constant 0 : i32
    %c0_i32_1 = arith.constant 0 : i32
    return %c0_i32, %c0_i32_0 : i32, i32
  }
  func.func @transform_5(%arg0: i32) -> (i32, i32) {
    %c0_i32 = arith.constant 0 : i32
    %c0_i32_0 = arith.constant 0 : i32
    %c0_i32_1 = arith.constant 0 : i32
    return %c0_i32, %c0_i32_0 : i32, i32
  }
  func.func @transform_6(%arg0: i32) -> (i32, i32) {
    %c0_i32 = arith.constant 0 : i32
    %c0_i32_0 = arith.constant 0 : i32
    %c0_i32_1 = arith.constant 0 : i32
    return %c0_i32, %c0_i32_0 : i32, i32
  }
  func.func @transform_7(%arg0: i32) -> (i32, i32) {
    %c0_i32 = arith.constant 0 : i32
    %c0_i32_0 = arith.constant 0 : i32
    %c0_i32_1 = arith.constant 0 : i32
    return %c0_i32, %c0_i32_0 : i32, i32
  }
  func.func @transform_8(%arg0: i32) -> (i32, i32) {
    %c0_i32 = arith.constant 0 : i32
    %c0_i32_0 = arith.constant 0 : i32
    %c0_i32_1 = arith.constant 0 : i32
    return %c0_i32, %c0_i32_0 : i32, i32
  }
  func.func @transform_9(%arg0: i32) -> (i32, i32) {
    %c0_i32 = arith.constant 0 : i32
    %c0_i32_0 = arith.constant 0 : i32
    return %c0_i32, %arg0 : i32, i32
  }
}

</mosaic_0001>

<llo_original>
// kernel: tpu_custom_call.1
$region0: #{tpu_custom_call.1}
  #allocation0 [shape = 'u32[]', space=smem, size = 0x4, offset = 0x4, fixed_abs, tag = 'smem constant byte address 0x4 - core index']
  #allocation1 [shape = 'u32[144,128]{1,0:T(1,128)}', space=vmem, size = 0x12000, scoped, tag = 'internal scratch']
  #allocation2 [shape = 'f32[1,1]{1,0:T(1,128)S(1)}', space=vmem, size = 0x200, scoped, tag = 'scoped memory for tpu_custom_call.1']
  %s0 = inlined_call_operand.vmem [shape: f32[16,24], index: 0, kind: input, shape index: {}]
  %s1 = inlined_call_operand.vmem [shape: f32[16,4], index: 1, kind: input, shape index: {}]
  %s2 = inlined_call_operand.hbm [shape: f32[24,512], index: 2, kind: input, shape index: {}]
  %s3 = inlined_call_operand.vmem [shape: f32[4,512], index: 3, kind: input, shape index: {}]
  %s4 = inlined_call_operand.vmem [shape: f32[1,512], index: 4, kind: input, shape index: {}]
  %s5 = inlined_call_operand.hbm [shape: f32[512,256], index: 5, kind: input, shape index: {}]
  %s6 = inlined_call_operand.vmem [shape: f32[1,256], index: 6, kind: input, shape index: {}]
  %s7 = inlined_call_operand.vmem [shape: f32[1,256], index: 7, kind: input, shape index: {}]
  %s8 = inlined_call_operand.<no memory space> [shape: f32[1,1], index: 8, kind: input, shape index: {}]
  %s9 = inlined_call_operand.hbm [shape: f32[1,16], index: 9, kind: output, shape index: {}]
  %s10 = sld [smem:[#allocation0]]
  $region54: #{tpu_custom_call.1} parent=0
    _
  %s12 = ssub.s32 1, %s10
  %s13 = scalar_select 0, %s12, %s10
  %v14 = vstv %s8
  %15 = vst [vmem:[#allocation2] sm:$0x1] %v14
  $region1: #{tpu_custom_call.1} parent=0
    #allocation3 [shape = 'u8[49152]{0}', space=vmem, size = 0xc000, scoped, tag = 'input window, operand 2, single buffered']
    #allocation4 [shape = 's32[1]{0}', space=sflag, size = 0x4, scoped, tag = 'scoped memory for tpu_custom_call.1']
    #allocation5 [shape = 's32[1]{0}', space=sflag, size = 0x4, scoped, tag = 'scoped memory for tpu_custom_call.1']
    #allocation6 [shape = 'u8[524288]{0}', space=vmem, size = 0x80000, scoped, tag = 'input window, operand 5, single buffered']
    #allocation7 [shape = 's32[1]{0}', space=sflag, size = 0x4, scoped, tag = 'scoped memory for tpu_custom_call.1']
    #allocation8 [shape = 'u8[512]{0}', space=vmem, size = 0x400, scoped, tag = 'output window, operand 0, single buffered']
    %16 = vsyncpa [#allocation4], 0
    %17 = vsyncpa [#allocation7], 0
    %18 = vsyncpa [#allocation5], 0
    // Predicated region
    $region2: #{tpu_custom_call.1} parent=1 // pred_check
      _
    $region3: #{tpu_custom_call.1} parent=1 // pred_check_branch
      %20 = sbr.rel (0) target = $region5
    $region4: #{tpu_custom_call.1} parent=1 // pred_region
      _
    $region5: #{tpu_custom_call.1} parent=1 // pred_fallthru
      _
    // Predicated region
    $region6: #{tpu_custom_call.1} parent=1 // pred_check
      _
    $region7: #{tpu_custom_call.1} parent=1 // pred_check_branch
      %22 = sbr.rel (0) target = $region9
    $region8: #{tpu_custom_call.1} parent=1 // pred_region
      _
    $region9: #{tpu_custom_call.1} parent=1 // pred_fallthru
      _
    // Predicated region
    $region10: #{tpu_custom_call.1} parent=1 // pred_check
      _
    $region11: #{tpu_custom_call.1} parent=1 // pred_check_branch
      %24 = sbr.rel (0) target = $region13
    $region12: #{tpu_custom_call.1} parent=1 // pred_region
      %s26 = ssub.s32 1536, 1536
      %27 = vsyncadd [#allocation4], %s26
      %s28 = sshll.u32 [#allocation3], 4
      %s29 = int_to_ptr.vmem [resolvable:$true] %s28
      %34 = dma.hbm_to_vmem [thread:$0]  %s2, 1536, %s29, [#allocation4], 512, 512, 32
    $region13: #{tpu_custom_call.1} parent=1 // pred_fallthru
      _
    // Predicated region
    $region14: #{tpu_custom_call.1} parent=1 // pred_check
      _
    $region15: #{tpu_custom_call.1} parent=1 // pred_check_branch
      %36 = sbr.rel (0) target = $region17
    $region16: #{tpu_custom_call.1} parent=1 // pred_region
      _
    $region17: #{tpu_custom_call.1} parent=1 // pred_fallthru
      _
    // Predicated region
    $region18: #{tpu_custom_call.1} parent=1 // pred_check
      _
    $region19: #{tpu_custom_call.1} parent=1 // pred_check_branch
      %38 = sbr.rel (0) target = $region21
    $region20: #{tpu_custom_call.1} parent=1 // pred_region
      _
    $region21: #{tpu_custom_call.1} parent=1 // pred_fallthru
      _
    // Predicated region
    $region22: #{tpu_custom_call.1} parent=1 // pred_check
      _
    $region23: #{tpu_custom_call.1} parent=1 // pred_check_branch
      %40 = sbr.rel (0) target = $region25
    $region24: #{tpu_custom_call.1} parent=1 // pred_region
      %s42 = ssub.s32 16384, 16384
      %43 = vsyncadd [#allocation7], %s42
      %s44 = sshll.u32 [#allocation6], 4
      %s45 = int_to_ptr.vmem [resolvable:$true] %s44
      %50 = dma.hbm_to_vmem [thread:$0]  %s5, 16384, %s45, [#allocation7], 256, 256, 16
    $region25: #{tpu_custom_call.1} parent=1 // pred_fallthru
      _
    // Predicated region
    $region26: #{tpu_custom_call.1} parent=1 // pred_check
      _
    $region27: #{tpu_custom_call.1} parent=1 // pred_check_branch
      %52 = sbr.rel (0) target = $region29
    $region28: #{tpu_custom_call.1} parent=1 // pred_region
      _
    $region29: #{tpu_custom_call.1} parent=1 // pred_fallthru
      _
    // Predicated region
    $region30: #{tpu_custom_call.1} parent=1 // pred_check
      _
    $region31: #{tpu_custom_call.1} parent=1 // pred_check_branch
      %54 = sbr.rel (0) target = $region33
    $region32: #{tpu_custom_call.1} parent=1 // pred_region
      _
    $region33: #{tpu_custom_call.1} parent=1 // pred_fallthru
      _
    // Predicated region
    $region34: #{tpu_custom_call.1} parent=1 // pred_check
      _
    $region35: #{tpu_custom_call.1} parent=1 // pred_check_branch
      %56 = sbr.rel (0) target = $region37
    $region36: #{tpu_custom_call.1} parent=1 // pred_region
      _
    $region37: #{tpu_custom_call.1} parent=1 // pred_fallthru
      _
    // Predicated region
    $region38: #{tpu_custom_call.1} parent=1 // pred_check
      _
    $region39: #{tpu_custom_call.1} parent=1 // pred_check_branch
      %58 = sbr.rel (0) target = $region41
    $region40: #{tpu_custom_call.1} parent=1 // pred_region
      %59 = dma.done [#allocation4], 1536
    $region41: #{tpu_custom_call.1} parent=1 // pred_fallthru
      _
    // Predicated region
    $region42: #{tpu_custom_call.1} parent=1 // pred_check
      _
    $region43: #{tpu_custom_call.1} parent=1 // pred_check_branch
      %61 = sbr.rel (0) target = $region45
    $region44: #{tpu_custom_call.1} parent=1 // pred_region
      %62 = dma.done [#allocation7], 16384
    $region45: #{tpu_custom_call.1} parent=1 // pred_fallthru
      _
    %v63 = vld [vmem:[%s0] sm:$0xff]
    %v64 = vld [vmem:[%s0 + $0x8] sm:$0xff]
    %v65 = vld [vmem:[#allocation3] sm:$0xff]
    %v66 = vld [vmem:[#allocation3 + $0x8] sm:$0xff]
    %v67 = vld [vmem:[#allocation3 + $0x10] sm:$0xff]
    %v68 = vld [vmem:[#allocation3 + $0x18] sm:$0xff]
    %v69 = vld [vmem:[#allocation3 + $0x20] sm:$0xff]
    %v70 = vld [vmem:[#allocation3 + $0x28] sm:$0xff]
    %v71 = vld [vmem:[#allocation3 + $0x30] sm:$0xff]
    %v72 = vld [vmem:[#allocation3 + $0x38] sm:$0xff]
    %v73 = vld [vmem:[#allocation3 + $0x40] sm:$0xff]
    %v74 = vld [vmem:[#allocation3 + $0x48] sm:$0xff]
    %v75 = vld [vmem:[#allocation3 + $0x50] sm:$0xff]
    %v76 = vld [vmem:[#allocation3 + $0x58] sm:$0xff]
    %v77 = vld [vmem:[%s1] sm:$0xff]
    %v78 = vld [vmem:[%s1 + $0x8] sm:$0xff]
    %v79 = vld [vmem:[%s3] sm:$0xff]
    %v80 = vld [vmem:[%s3 + $0x8] sm:$0xff]
    %v83 = vcombine.high %v79, %v79
    %v84 = vcombine.high %v80, %v80
    %vm85 = vcmask 31744
    %v87 = vsel %vm85, %v77, 0
    %v90 = vsel %vm85, %v78, 0
    %vm92 = vcmask 1043456
    %v93 = vsel %vm92, %v79, 0
    %v95 = vsel %vm92, %v83, 0
    %v97 = vsel %vm92, %v80, 0
    %v99 = vsel %vm92, %v84, 0
    %101 = vmatprep.subr.mxu0 %v95
    %102 = vmatpush1.msra.mxu0 %v93
    %103 = vmatprep.subr.mxu0 0.0
    %104 = vmatpush1.msra.mxu0 0.0
    %105 = vmatprep.subr.mxu0 0.0
    %106 = vmatpush1.msra.mxu0 0.0
    %107 = vmatprep.subr.mxu0 0.0
    %108 = vmatpush1.msra.mxu0 0.0
    %109 = vmatprep.subr.mxu0 0.0
    %110 = vmatpush1.msra.mxu0 0.0
    %111 = vmatprep.subr.mxu0 0.0
    %112 = vmatpush1.msra.mxu0 0.0
    %113 = vmatprep.subr.mxu0 0.0
    %114 = vmatpush1.msra.mxu0 0.0
    %115 = vmatprep.subr.mxu0 0.0
    %116 = vmatpush1.msra.mxu0 0.0
    %117 = vmatprep.subr.mxu0 0.0
    %118 = vmatpush1.msra.mxu0 0.0
    %119 = vmatprep.subr.mxu0 0.0
    %120 = vmatpush1.msra.mxu0 0.0
    %121 = vmatprep.subr.mxu0 0.0
    %122 = vmatpush1.msra.mxu0 0.0
    %123 = vmatprep.subr.mxu0 0.0
    %124 = vmatpush1.msra.mxu0 0.0
    %125 = vmatprep.subr.mxu0 0.0
    %126 = vmatpush1.msra.mxu0 0.0
    %127 = vmatprep.subr.mxu0 0.0
    %128 = vmatpush1.msra.mxu0 0.0
    %129 = vmatprep.subr.mxu0 0.0
    %130 = vmatpush1.msra.mxu0 0.0
    %131 = vmatprep.subr.mxu0 0.0
    %132 = vmatpush1.msra.mxu0 0.0
    %133 = vmatprep.subr.mxu0 0.0
    %134 = vmatpush1.msra.mxu0 0.0
    %135 = vmatprep.subr.mxu0 0.0
    %136 = vmatpush1.msra.mxu0 0.0
    %137 = vmatprep.subr.mxu0 0.0
    %138 = vmatpush1.msra.mxu0 0.0
    %139 = vmatprep.subr.mxu0 0.0
    %140 = vmatpush1.msra.mxu0 0.0
    %141 = vmatprep.subr.mxu0 0.0
    %142 = vmatpush1.msra.mxu0 0.0
    %143 = vmatprep.subr.mxu0 0.0
    %144 = vmatpush1.msra.mxu0 0.0
    %145 = vmatprep.subr.mxu0 0.0
    %146 = vmatpush1.msra.mxu0 0.0
    %147 = vmatprep.subr.mxu0 0.0
    %148 = vmatpush1.msra.mxu0 0.0
    %149 = vmatprep.subr.mxu0 0.0
    %150 = vmatpush1.msra.mxu0 0.0
    %151 = vmatprep.subr.mxu0 0.0
    %152 = vmatpush1.msra.mxu0 0.0
    %153 = vmatprep.subr.mxu0 0.0
    %154 = vmatpush1.msra.mxu0 0.0
    %155 = vmatprep.subr.mxu0 0.0
    %156 = vmatpush1.msra.mxu0 0.0
    %157 = vmatprep.subr.mxu0 0.0
    %158 = vmatpush1.msra.mxu0 0.0
    %159 = vmatprep.subr.mxu0 0.0
    %160 = vmatpush1.msra.mxu0 0.0
    %161 = vmatprep.subr.mxu0 0.0
    %162 = vmatpush1.msra.mxu0 0.0
    %163 = vmatprep.subr.mxu0 0.0
    %164 = vmatpush1.msra.mxu0 0.0
    %165 = vmatprep.mubr.f32.mxu0 0.0
    %166 = vmatmul.mubr.f32.gmra.mrb[0].mxu0 %v87
    %v167 = vpop.f32.mrb[0].mxu0
    %v168 = vadd.f32 0.0, %v167
    %v169 = vpop.f32.mrb[0].mxu0
    %v170 = vadd.f32 0.0, %v169
    %171 = vmatprep.mubr.f32.mxu0 0.0
    %172 = vmatmul.mubr.f32.gmra.mrb[0].mxu0 %v90
    %v173 = vpop.f32.mrb[0].mxu0
    %v174 = vadd.f32 0.0, %v173
    %v175 = vpop.f32.mrb[0].mxu0
    %v176 = vadd.f32 0.0, %v175
    %177 = vdwg.mxu0
    %178 = vmatprep.subr.mxu0 %v99
    %179 = vmatpush1.msra.mxu0 %v97
    %180 = vmatprep.subr.mxu0 0.0
    %181 = vmatpush1.msra.mxu0 0.0
    %182 = vmatprep.subr.mxu0 0.0
    %183 = vmatpush1.msra.mxu0 0.0
    %184 = vmatprep.subr.mxu0 0.0
    %185 = vmatpush1.msra.mxu0 0.0
    %186 = vmatprep.subr.mxu0 0.0
    %187 = vmatpush1.msra.mxu0 0.0
    %188 = vmatprep.subr.mxu0 0.0
    %189 = vmatpush1.msra.mxu0 0.0
    %190 = vmatprep.subr.mxu0 0.0
    %191 = vmatpush1.msra.mxu0 0.0
    %192 = vmatprep.subr.mxu0 0.0
    %193 = vmatpush1.msra.mxu0 0.0
    %194 = vmatprep.subr.mxu0 0.0
    %195 = vmatpush1.msra.mxu0 0.0
    %196 = vmatprep.subr.mxu0 0.0
    %197 = vmatpush1.msra.mxu0 0.0
    %198 = vmatprep.subr.mxu0 0.0
    %199 = vmatpush1.msra.mxu0 0.0
    %200 = vmatprep.subr.mxu0 0.0
    %201 = vmatpush1.msra.mxu0 0.0
    %202 = vmatprep.subr.mxu0 0.0
    %203 = vmatpush1.msra.mxu0 0.0
    %204 = vmatprep.subr.mxu0 0.0
    %205 = vmatpush1.msra.mxu0 0.0
    %206 = vmatprep.subr.mxu0 0.0
    %207 = vmatpush1.msra.mxu0 0.0
    %208 = vmatprep.subr.mxu0 0.0
    %209 = vmatpush1.msra.mxu0 0.0
    %210 = vmatprep.subr.mxu0 0.0
    %211 = vmatpush1.msra.mxu0 0.0
    %212 = vmatprep.subr.mxu0 0.0
    %213 = vmatpush1.msra.mxu0 0.0
    %214 = vmatprep.subr.mxu0 0.0
    %215 = vmatpush1.msra.mxu0 0.0
    %216 = vmatprep.subr.mxu0 0.0
    %217 = vmatpush1.msra.mxu0 0.0
    %218 = vmatprep.subr.mxu0 0.0
    %219 = vmatpush1.msra.mxu0 0.0
    %220 = vmatprep.subr.mxu0 0.0
    %221 = vmatpush1.msra.mxu0 0.0
    %222 = vmatprep.subr.mxu0 0.0
    %223 = vmatpush1.msra.mxu0 0.0
    %224 = vmatprep.subr.mxu0 0.0
    %225 = vmatpush1.msra.mxu0 0.0
    %226 = vmatprep.subr.mxu0 0.0
    %227 = vmatpush1.msra.mxu0 0.0
    %228 = vmatprep.subr.mxu0 0.0
    %229 = vmatpush1.msra.mxu0 0.0
    %230 = vmatprep.subr.mxu0 0.0
    %231 = vmatpush1.msra.mxu0 0.0
    %232 = vmatprep.subr.mxu0 0.0
    %233 = vmatpush1.msra.mxu0 0.0
    %234 = vmatprep.subr.mxu0 0.0
    %235 = vmatpush1.msra.mxu0 0.0
    %236 = vmatprep.subr.mxu0 0.0
    %237 = vmatpush1.msra.mxu0 0.0
    %238 = vmatprep.subr.mxu0 0.0
    %239 = vmatpush1.msra.mxu0 0.0
    %240 = vmatprep.subr.mxu0 0.0
    %241 = vmatpush1.msra.mxu0 0.0
    %242 = vmatprep.mubr.f32.mxu0 0.0
    %243 = vmatmul.mubr.f32.gmra.mrb[0].mxu0 %v87
    %v244 = vpop.f32.mrb[0].mxu0
    %v245 = vadd.f32 0.0, %v244
    %v246 = vpop.f32.mrb[0].mxu0
    %v247 = vadd.f32 0.0, %v246
    %248 = vmatprep.mubr.f32.mxu0 0.0
    %249 = vmatmul.mubr.f32.gmra.mrb[0].mxu0 %v90
    %v250 = vpop.f32.mrb[0].mxu0
    %v251 = vadd.f32 0.0, %v250
    %v252 = vpop.f32.mrb[0].mxu0
    %v253 = vadd.f32 0.0, %v252
    %254 = vdwg.mxu0
    %vm255 = vcmask 195584
    %v257 = vsel %vm255, %v63, 0
    %v260 = vsel %vm255, %v64, 0
    %262 = vmatprep.subr.mxu0 %v66
    %263 = vmatpush1.msra.mxu0 %v65
    %264 = vmatprep.subr.mxu0 %v70
    %265 = vmatpush1.msra.mxu0 %v69
    %266 = vmatprep.subr.mxu0 %v74
    %267 = vmatpush1.msra.mxu0 %v73
    %268 = vmatprep.subr.mxu0 0.0
    %269 = vmatpush1.msra.mxu0 0.0
    %270 = vmatprep.subr.mxu0 0.0
    %271 = vmatpush1.msra.mxu0 0.0
    %272 = vmatprep.subr.mxu0 0.0
    %273 = vmatpush1.msra.mxu0 0.0
    %274 = vmatprep.subr.mxu0 0.0
    %275 = vmatpush1.msra.mxu0 0.0
    %276 = vmatprep.subr.mxu0 0.0
    %277 = vmatpush1.msra.mxu0 0.0
    %278 = vmatprep.subr.mxu0 0.0
    %279 = vmatpush1.msra.mxu0 0.0
    %280 = vmatprep.subr.mxu0 0.0
    %281 = vmatpush1.msra.mxu0 0.0
    %282 = vmatprep.subr.mxu0 0.0
    %283 = vmatpush1.msra.mxu0 0.0
    %284 = vmatprep.subr.mxu0 0.0
    %285 = vmatpush1.msra.mxu0 0.0
    %286 = vmatprep.subr.mxu0 0.0
    %287 = vmatpush1.msra.mxu0 0.0
    %288 = vmatprep.subr.mxu0 0.0
    %289 = vmatpush1.msra.mxu0 0.0
    %290 = vmatprep.subr.mxu0 0.0
    %291 = vmatpush1.msra.mxu0 0.0
    %292 = vmatprep.subr.mxu0 0.0
    %293 = vmatpush1.msra.mxu0 0.0
    %294 = vmatprep.subr.mxu0 0.0
    %295 = vmatpush1.msra.mxu0 0.0
    %296 = vmatprep.subr.mxu0 0.0
    %297 = vmatpush1.msra.mxu0 0.0
    %298 = vmatprep.subr.mxu0 0.0
    %299 = vmatpush1.msra.mxu0 0.0
    %300 = vmatprep.subr.mxu0 0.0
    %301 = vmatpush1.msra.mxu0 0.0
    %302 = vmatprep.subr.mxu0 0.0
    %303 = vmatpush1.msra.mxu0 0.0
    %304 = vmatprep.subr.mxu0 0.0
    %305 = vmatpush1.msra.mxu0 0.0
    %306 = vmatprep.subr.mxu0 0.0
    %307 = vmatpush1.msra.mxu0 0.0
    %308 = vmatprep.subr.mxu0 0.0
    %309 = vmatpush1.msra.mxu0 0.0
    %310 = vmatprep.subr.mxu0 0.0
    %311 = vmatpush1.msra.mxu0 0.0
    %312 = vmatprep.subr.mxu0 0.0
    %313 = vmatpush1.msra.mxu0 0.0
    %314 = vmatprep.subr.mxu0 0.0
    %315 = vmatpush1.msra.mxu0 0.0
    %316 = vmatprep.subr.mxu0 0.0
    %317 = vmatpush1.msra.mxu0 0.0
    %318 = vmatprep.subr.mxu0 0.0
    %319 = vmatpush1.msra.mxu0 0.0
    %320 = vmatprep.subr.mxu0 0.0
    %321 = vmatpush1.msra.mxu0 0.0
    %322 = vmatprep.subr.mxu0 0.0
    %323 = vmatpush1.msra.mxu0 0.0
    %324 = vmatprep.subr.mxu0 0.0
    %325 = vmatpush1.msra.mxu0 0.0
    %326 = vmatprep.mubr.f32.mxu0 0.0
    %327 = vmatmul.mubr.f32.gmra.mrb[0].mxu0 %v257
    %v328 = vpop.f32.mrb[0].mxu0
    %v329 = vadd.f32 %v168, %v328
    %v330 = vpop.f32.mrb[0].mxu0
    %v331 = vadd.f32 %v170, %v330
    %332 = vmatprep.mubr.f32.mxu0 0.0
    %333 = vmatmul.mubr.f32.gmra.mrb[0].mxu0 %v260
    %v334 = vpop.f32.mrb[0].mxu0
    %v335 = vadd.f32 %v174, %v334
    %v336 = vpop.f32.mrb[0].mxu0
    %v337 = vadd.f32 %v176, %v336
    %338 = vdwg.mxu0
    %339 = vmatprep.subr.mxu0 %v68
    %340 = vmatpush1.msra.mxu0 %v67
    %341 = vmatprep.subr.mxu0 %v72
    %342 = vmatpush1.msra.mxu0 %v71
    %343 = vmatprep.subr.mxu0 %v76
    %344 = vmatpush1.msra.mxu0 %v75
    %345 = vmatprep.subr.mxu0 0.0
    %346 = vmatpush1.msra.mxu0 0.0
    %347 = vmatprep.subr.mxu0 0.0
    %348 = vmatpush1.msra.mxu0 0.0
    %349 = vmatprep.subr.mxu0 0.0
    %350 = vmatpush1.msra.mxu0 0.0
    %351 = vmatprep.subr.mxu0 0.0
    %352 = vmatpush1.msra.mxu0 0.0
    %353 = vmatprep.subr.mxu0 0.0
    %354 = vmatpush1.msra.mxu0 0.0
    %355 = vmatprep.subr.mxu0 0.0
    %356 = vmatpush1.msra.mxu0 0.0
    %357 = vmatprep.subr.mxu0 0.0
    %358 = vmatpush1.msra.mxu0 0.0
    %359 = vmatprep.subr.mxu0 0.0
    %360 = vmatpush1.msra.mxu0 0.0
    %361 = vmatprep.subr.mxu0 0.0
    %362 = vmatpush1.msra.mxu0 0.0
    %363 = vmatprep.subr.mxu0 0.0
    %364 = vmatpush1.msra.mxu0 0.0
    %365 = vmatprep.subr.mxu0 0.0
    %366 = vmatpush1.msra.mxu0 0.0
    %367 = vmatprep.subr.mxu0 0.0
    %368 = vmatpush1.msra.mxu0 0.0
    %369 = vmatprep.subr.mxu0 0.0
    %370 = vmatpush1.msra.mxu0 0.0
    %371 = vmatprep.subr.mxu0 0.0
    %372 = vmatpush1.msra.mxu0 0.0
    %373 = vmatprep.subr.mxu0 0.0
    %374 = vmatpush1.msra.mxu0 0.0
    %375 = vmatprep.subr.mxu0 0.0
    %376 = vmatpush1.msra.mxu0 0.0
    %377 = vmatprep.subr.mxu0 0.0
    %378 = vmatpush1.msra.mxu0 0.0
    %379 = vmatprep.subr.mxu0 0.0
    %380 = vmatpush1.msra.mxu0 0.0
    %381 = vmatprep.subr.mxu0 0.0
    %382 = vmatpush1.msra.mxu0 0.0
    %383 = vmatprep.subr.mxu0 0.0
    %384 = vmatpush1.msra.mxu0 0.0
    %385 = vmatprep.subr.mxu0 0.0
    %386 = vmatpush1.msra.mxu0 0.0
    %387 = vmatprep.subr.mxu0 0.0
    %388 = vmatpush1.msra.mxu0 0.0
    %389 = vmatprep.subr.mxu0 0.0
    %390 = vmatpush1.msra.mxu0 0.0
    %391 = vmatprep.subr.mxu0 0.0
    %392 = vmatpush1.msra.mxu0 0.0
    %393 = vmatprep.subr.mxu0 0.0
    %394 = vmatpush1.msra.mxu0 0.0
    %395 = vmatprep.subr.mxu0 0.0
    %396 = vmatpush1.msra.mxu0 0.0
    %397 = vmatprep.subr.mxu0 0.0
    %398 = vmatpush1.msra.mxu0 0.0
    %399 = vmatprep.subr.mxu0 0.0
    %400 = vmatpush1.msra.mxu0 0.0
    %401 = vmatprep.subr.mxu0 0.0
    %402 = vmatpush1.msra.mxu0 0.0
    %403 = vmatprep.mubr.f32.mxu0 0.0
    %404 = vmatmul.mubr.f32.gmra.mrb[0].mxu0 %v257
    %v405 = vpop.f32.mrb[0].mxu0
    %v406 = vadd.f32 %v245, %v405
    %v407 = vpop.f32.mrb[0].mxu0
    %v408 = vadd.f32 %v247, %v407
    %409 = vmatprep.mubr.f32.mxu0 0.0
    %410 = vmatmul.mubr.f32.gmra.mrb[0].mxu0 %v260
    %v411 = vpop.f32.mrb[0].mxu0
    %v412 = vadd.f32 %v251, %v411
    %v413 = vpop.f32.mrb[0].mxu0
    %v414 = vadd.f32 %v253, %v413
    %415 = vdwg.mxu0
    %v416 = vld [vmem:[%s4] sm:$0xf]
    %v418 = vlaneseq
    %v419 = vshrl.u32 %v418, 7
    %v420 = vsub.s32 0, %v419
    %v421 = vrot.slane %v416, %v420
    %v422 = vlaneseq
    %v423 = vshrl.u32 %v422, 7
    %v424 = vsub.s32 1, %v423
    %v425 = vrot.slane %v416, %v424
    %v426 = vlaneseq
    %v427 = vshrl.u32 %v426, 7
    %v428 = vsub.s32 2, %v427
    %v429 = vrot.slane %v416, %v428
    %v430 = vlaneseq
    %v431 = vshrl.u32 %v430, 7
    %v432 = vsub.s32 3, %v431
    %v433 = vrot.slane %v416, %v432
    %v438 = vadd.f32 %v329, %v421
    %v439 = vadd.f32 %v331, %v425
    %v440 = vadd.f32 %v406, %v429
    %v441 = vadd.f32 %v408, %v433
    %v442 = vadd.f32 %v335, %v421
    %v443 = vadd.f32 %v337, %v425
    %v444 = vadd.f32 %v412, %v429
    %v445 = vadd.f32 %v414, %v433
    %v446 = vmax.f32 %v438, 0.0
    %v447 = vmax.f32 %v439, 0.0
    %v448 = vmax.f32 %v440, 0.0
    %v449 = vmax.f32 %v441, 0.0
    %v450 = vmax.f32 %v442, 0.0
    %v451 = vmax.f32 %v443, 0.0
    %v452 = vmax.f32 %v444, 0.0
    %v453 = vmax.f32 %v445, 0.0
    %v454 = vld [vmem:[#allocation6] sm:$0xff]
    %v455 = vld [vmem:[#allocation6 + $0x8] sm:$0xff]
    %v456 = vld [vmem:[#allocation6 + $0x10] sm:$0xff]
    %v457 = vld [vmem:[#allocation6 + $0x18] sm:$0xff]
    %v458 = vld [vmem:[#allocation6 + $0x20] sm:$0xff]
    %v459 = vld [vmem:[#allocation6 + $0x28] sm:$0xff]
    %v460 = vld [vmem:[#allocation6 + $0x30] sm:$0xff]
    %v461 = vld [vmem:[#allocation6 + $0x38] sm:$0xff]
    %v462 = vld [vmem:[#allocation6 + $0x40] sm:$0xff]
    %v463 = vld [vmem:[#allocation6 + $0x48] sm:$0xff]
    %v464 = vld [vmem:[#allocation6 + $0x50] sm:$0xff]
    %v465 = vld [vmem:[#allocation6 + $0x58] sm:$0xff]
    %v466 = vld [vmem:[#allocation6 + $0x60] sm:$0xff]
    %v467 = vld [vmem:[#allocation6 + $0x68] sm:$0xff]
    %v468 = vld [vmem:[#allocation6 + $0x70] sm:$0xff]
    %v469 = vld [vmem:[#allocation6 + $0x78] sm:$0xff]
    %v470 = vld [vmem:[#allocation6 + $0x80] sm:$0xff]
    %v471 = vld [vmem:[#allocation6 + $0x88] sm:$0xff]
    %v472 = vld [vmem:[#allocation6 + $0x90] sm:$0xff]
    %v473 = vld [vmem:[#allocation6 + $0x98] sm:$0xff]
    %v474 = vld [vmem:[#allocation6 + $0xa0] sm:$0xff]
    %v475 = vld [vmem:[#allocation6 + $0xa8] sm:$0xff]
    %v476 = vld [vmem:[#allocation6 + $0xb0] sm:$0xff]
    %v477 = vld [vmem:[#allocation6 + $0xb8] sm:$0xff]
    %v478 = vld [vmem:[#allocation6 + $0xc0] sm:$0xff]
    %v479 = vld [vmem:[#allocation6 + $0xc8] sm:$0xff]
    %v480 = vld [vmem:[#allocation6 + $0xd0] sm:$0xff]
    %v481 = vld [vmem:[#allocation6 + $0xd8] sm:$0xff]
    %v482 = vld [vmem:[#allocation6 + $0xe0] sm:$0xff]
    %v483 = vld [vmem:[#allocation6 + $0xe8] sm:$0xff]
    %v484 = vld [vmem:[#allocation6 + $0xf0] sm:$0xff]
    %v485 = vld [vmem:[#allocation6 + $0xf8] sm:$0xff]
    %v486 = vld [vmem:[#allocation6 + $0x100] sm:$0xff]
    %v487 = vld [vmem:[#allocation6 + $0x108] sm:$0xff]
    %v488 = vld [vmem:[#allocation6 + $0x110] sm:$0xff]
    %v489 = vld [vmem:[#allocation6 + $0x118] sm:$0xff]
    %v490 = vld [vmem:[#allocation6 + $0x120] sm:$0xff]
    %v491 = vld [vmem:[#allocation6 + $0x128] sm:$0xff]
    %v492 = vld [vmem:[#allocation6 + $0x130] sm:$0xff]
    %v493 = vld [vmem:[#allocation6 + $0x138] sm:$0xff]
    %v494 = vld [vmem:[#allocation6 + $0x140] sm:$0xff]
    %v495 = vld [vmem:[#allocation6 + $0x148] sm:$0xff]
    %v496 = vld [vmem:[#allocation6 + $0x150] sm:$0xff]
    %v497 = vld [vmem:[#allocation6 + $0x158] sm:$0xff]
    %v498 = vld [vmem:[#allocation6 + $0x160] sm:$0xff]
    %v499 = vld [vmem:[#allocation6 + $0x168] sm:$0xff]
    %v500 = vld [vmem:[#allocation6 + $0x170] sm:$0xff]
    %v501 = vld [vmem:[#allocation6 + $0x178] sm:$0xff]
    %v502 = vld [vmem:[#allocation6 + $0x180] sm:$0xff]
    %v503 = vld [vmem:[#allocation6 + $0x188] sm:$0xff]
    %v504 = vld [vmem:[#allocation6 + $0x190] sm:$0xff]
    %v505 = vld [vmem:[#allocation6 + $0x198] sm:$0xff]
    %v506 = vld [vmem:[#allocation6 + $0x1a0] sm:$0xff]
    %v507 = vld [vmem:[#allocation6 + $0x1a8] sm:$0xff]
    %v508 = vld [vmem:[#allocation6 + $0x1b0] sm:$0xff]
    %v509 = vld [vmem:[#allocation6 + $0x1b8] sm:$0xff]
    %v510 = vld [vmem:[#allocation6 + $0x1c0] sm:$0xff]
    %v511 = vld [vmem:[#allocation6 + $0x1c8] sm:$0xff]
    %v512 = vld [vmem:[#allocation6 + $0x1d0] sm:$0xff]
    %v513 = vld [vmem:[#allocation6 + $0x1d8] sm:$0xff]
    %v514 = vld [vmem:[#allocation6 + $0x1e0] sm:$0xff]
    %v515 = vld [vmem:[#allocation6 + $0x1e8] sm:$0xff]
    %v516 = vld [vmem:[#allocation6 + $0x1f0] sm:$0xff]
    %v517 = vld [vmem:[#allocation6 + $0x1f8] sm:$0xff]
    %v518 = vld [vmem:[#allocation6 + $0x200] sm:$0xff]
    %v519 = vld [vmem:[#allocation6 + $0x208] sm:$0xff]
    %v520 = vld [vmem:[#allocation6 + $0x210] sm:$0xff]
    %v521 = vld [vmem:[#allocation6 + $0x218] sm:$0xff]
    %v522 = vld [vmem:[#allocation6 + $0x220] sm:$0xff]
    %v523 = vld [vmem:[#allocation6 + $0x228] sm:$0xff]
    %v524 = vld [vmem:[#allocation6 + $0x230] sm:$0xff]
    %v525 = vld [vmem:[#allocation6 + $0x238] sm:$0xff]
    %v526 = vld [vmem:[#allocation6 + $0x240] sm:$0xff]
    %v527 = vld [vmem:[#allocation6 + $0x248] sm:$0xff]
    %v528 = vld [vmem:[#allocation6 + $0x250] sm:$0xff]
    %v529 = vld [vmem:[#allocation6 + $0x258] sm:$0xff]
    %v530 = vld [vmem:[#allocation6 + $0x260] sm:$0xff]
    %v531 = vld [vmem:[#allocation6 + $0x268] sm:$0xff]
    %v532 = vld [vmem:[#allocation6 + $0x270] sm:$0xff]
    %v533 = vld [vmem:[#allocation6 + $0x278] sm:$0xff]
    %v534 = vld [vmem:[#allocation6 + $0x280] sm:$0xff]
    %v535 = vld [vmem:[#allocation6 + $0x288] sm:$0xff]
    %v536 = vld [vmem:[#allocation6 + $0x290] sm:$0xff]
    %v537 = vld [vmem:[#allocation6 + $0x298] sm:$0xff]
    %v538 = vld [vmem:[#allocation6 + $0x2a0] sm:$0xff]
    %v539 = vld [vmem:[#allocation6 + $0x2a8] sm:$0xff]
    %v540 = vld [vmem:[#allocation6 + $0x2b0] sm:$0xff]
    %v541 = vld [vmem:[#allocation6 + $0x2b8] sm:$0xff]
    %v542 = vld [vmem:[#allocation6 + $0x2c0] sm:$0xff]
    %v543 = vld [vmem:[#allocation6 + $0x2c8] sm:$0xff]
    %v544 = vld [vmem:[#allocation6 + $0x2d0] sm:$0xff]
    %v545 = vld [vmem:[#allocation6 + $0x2d8] sm:$0xff]
    %v546 = vld [vmem:[#allocation6 + $0x2e0] sm:$0xff]
    %v547 = vld [vmem:[#allocation6 + $0x2e8] sm:$0xff]
    %v548 = vld [vmem:[#allocation6 + $0x2f0] sm:$0xff]
    %v549 = vld [vmem:[#allocation6 + $0x2f8] sm:$0xff]
    %v550 = vld [vmem:[#allocation6 + $0x300] sm:$0xff]
    %v551 = vld [vmem:[#allocation6 + $0x308] sm:$0xff]
    %v552 = vld [vmem:[#allocation6 + $0x310] sm:$0xff]
    %v553 = vld [vmem:[#allocation6 + $0x318] sm:$0xff]
    %v554 = vld [vmem:[#allocation6 + $0x320] sm:$0xff]
    %v555 = vld [vmem:[#allocation6 + $0x328] sm:$0xff]
    %v556 = vld [vmem:[#allocation6 + $0x330] sm:$0xff]
    %v557 = vld [vmem:[#allocation6 + $0x338] sm:$0xff]
    %v558 = vld [vmem:[#allocation6 + $0x340] sm:$0xff]
    %v559 = vld [vmem:[#allocation6 + $0x348] sm:$0xff]
    %v560 = vld [vmem:[#allocation6 + $0x350] sm:$0xff]
    %v561 = vld [vmem:[#allocation6 + $0x358] sm:$0xff]
    %v562 = vld [vmem:[#allocation6 + $0x360] sm:$0xff]
    %v563 = vld [vmem:[#allocation6 + $0x368] sm:$0xff]
    %v564 = vld [vmem:[#allocation6 + $0x370] sm:$0xff]
    %v565 = vld [vmem:[#allocation6 + $0x378] sm:$0xff]
    %v566 = vld [vmem:[#allocation6 + $0x380] sm:$0xff]
    %v567 = vld [vmem:[#allocation6 + $0x388] sm:$0xff]
    %v568 = vld [vmem:[#allocation6 + $0x390] sm:$0xff]
    %v569 = vld [vmem:[#allocation6 + $0x398] sm:$0xff]
    %v570 = vld [vmem:[#allocation6 + $0x3a0] sm:$0xff]
    %v571 = vld [vmem:[#allocation6 + $0x3a8] sm:$0xff]
    %v572 = vld [vmem:[#allocation6 + $0x3b0] sm:$0xff]
    %v573 = vld [vmem:[#allocation6 + $0x3b8] sm:$0xff]
    %v574 = vld [vmem:[#allocation6 + $0x3c0] sm:$0xff]
    %v575 = vld [vmem:[#allocation6 + $0x3c8] sm:$0xff]
    %v576 = vld [vmem:[#allocation6 + $0x3d0] sm:$0xff]
    %v577 = vld [vmem:[#allocation6 + $0x3d8] sm:$0xff]
    %v578 = vld [vmem:[#allocation6 + $0x3e0] sm:$0xff]
    %v579 = vld [vmem:[#allocation6 + $0x3e8] sm:$0xff]
    %v580 = vld [vmem:[#allocation6 + $0x3f0] sm:$0xff]
    %v581 = vld [vmem:[#allocation6 + $0x3f8] sm:$0xff]
    %v582 = vld [vmem:[%s6] sm:$0x3]
    %v584 = vlaneseq
    %v585 = vshrl.u32 %v584, 7
    %v586 = vsub.s32 0, %v585
    %v587 = vrot.slane %v582, %v586
    %v588 = vlaneseq
    %v589 = vshrl.u32 %v588, 7
    %v590 = vsub.s32 1, %v589
    %v591 = vrot.slane %v582, %v590
    %594 = vmatprep.subr.mxu0 %v455
    %595 = vmatpush1.msra.mxu0 %v454
    %596 = vmatprep.subr.mxu0 %v457
    %597 = vmatpush1.msra.mxu0 %v456
    %598 = vmatprep.subr.mxu0 %v459
    %599 = vmatpush1.msra.mxu0 %v458
    %600 = vmatprep.subr.mxu0 %v461
    %601 = vmatpush1.msra.mxu0 %v460
    %602 = vmatprep.subr.mxu0 %v463
    %603 = vmatpush1.msra.mxu0 %v462
    %604 = vmatprep.subr.mxu0 %v465
    %605 = vmatpush1.msra.mxu0 %v464
    %606 = vmatprep.subr.mxu0 %v467
    %607 = vmatpush1.msra.mxu0 %v466
    %608 = vmatprep.subr.mxu0 %v469
    %609 = vmatpush1.msra.mxu0 %v468
    %610 = vmatprep.subr.mxu0 %v471
    %611 = vmatpush1.msra.mxu0 %v470
    %612 = vmatprep.subr.mxu0 %v473
    %613 = vmatpush1.msra.mxu0 %v472
    %614 = vmatprep.subr.mxu0 %v475
    %615 = vmatpush1.msra.mxu0 %v474
    %616 = vmatprep.subr.mxu0 %v477
    %617 = vmatpush1.msra.mxu0 %v476
    %618 = vmatprep.subr.mxu0 %v479
    %619 = vmatpush1.msra.mxu0 %v478
    %620 = vmatprep.subr.mxu0 %v481
    %621 = vmatpush1.msra.mxu0 %v480
    %622 = vmatprep.subr.mxu0 %v483
    %623 = vmatpush1.msra.mxu0 %v482
    %624 = vmatprep.subr.mxu0 %v485
    %625 = vmatpush1.msra.mxu0 %v484
    %626 = vmatprep.subr.mxu0 %v487
    %627 = vmatpush1.msra.mxu0 %v486
    %628 = vmatprep.subr.mxu0 %v489
    %629 = vmatpush1.msra.mxu0 %v488
    %630 = vmatprep.subr.mxu0 %v491
    %631 = vmatpush1.msra.mxu0 %v490
    %632 = vmatprep.subr.mxu0 %v493
    %633 = vmatpush1.msra.mxu0 %v492
    %634 = vmatprep.subr.mxu0 %v495
    %635 = vmatpush1.msra.mxu0 %v494
    %636 = vmatprep.subr.mxu0 %v497
    %637 = vmatpush1.msra.mxu0 %v496
    %638 = vmatprep.subr.mxu0 %v499
    %639 = vmatpush1.msra.mxu0 %v498
    %640 = vmatprep.subr.mxu0 %v501
    %641 = vmatpush1.msra.mxu0 %v500
    %642 = vmatprep.subr.mxu0 %v503
    %643 = vmatpush1.msra.mxu0 %v502
    %644 = vmatprep.subr.mxu0 %v505
    %645 = vmatpush1.msra.mxu0 %v504
    %646 = vmatprep.subr.mxu0 %v507
    %647 = vmatpush1.msra.mxu0 %v506
    %648 = vmatprep.subr.mxu0 %v509
    %649 = vmatpush1.msra.mxu0 %v508
    %650 = vmatprep.subr.mxu0 %v511
    %651 = vmatpush1.msra.mxu0 %v510
    %652 = vmatprep.subr.mxu0 %v513
    %653 = vmatpush1.msra.mxu0 %v512
    %654 = vmatprep.subr.mxu0 %v515
    %655 = vmatpush1.msra.mxu0 %v514
    %656 = vmatprep.subr.mxu0 %v517
    %657 = vmatpush1.msra.mxu0 %v516
    %658 = vmatprep.mubr.f32.mxu0 %v447
    %659 = vmatmul.mubr.f32.gmra.mrb[0].mxu0 %v446
    %v660 = vpop.f32.mrb[0].mxu0
    %v661 = vadd.f32 %v587, %v660
    %v662 = vpop.f32.mrb[0].mxu0
    %v663 = vadd.f32 %v591, %v662
    %664 = vmatprep.mubr.f32.mxu0 %v451
    %665 = vmatmul.mubr.f32.gmra.mrb[0].mxu0 %v450
    %v666 = vpop.f32.mrb[0].mxu0
    %v667 = vadd.f32 %v587, %v666
    %v668 = vpop.f32.mrb[0].mxu0
    %v669 = vadd.f32 %v591, %v668
    %670 = vdwg.mxu0
    %671 = vmatprep.subr.mxu0 %v519
    %672 = vmatpush1.msra.mxu0 %v518
    %673 = vmatprep.subr.mxu0 %v521
    %674 = vmatpush1.msra.mxu0 %v520
    %675 = vmatprep.subr.mxu0 %v523
    %676 = vmatpush1.msra.mxu0 %v522
    %677 = vmatprep.subr.mxu0 %v525
    %678 = vmatpush1.msra.mxu0 %v524
    %679 = vmatprep.subr.mxu0 %v527
    %680 = vmatpush1.msra.mxu0 %v526
    %681 = vmatprep.subr.mxu0 %v529
    %682 = vmatpush1.msra.mxu0 %v528
    %683 = vmatprep.subr.mxu0 %v531
    %684 = vmatpush1.msra.mxu0 %v530
    %685 = vmatprep.subr.mxu0 %v533
    %686 = vmatpush1.msra.mxu0 %v532
    %687 = vmatprep.subr.mxu0 %v535
    %688 = vmatpush1.msra.mxu0 %v534
    %689 = vmatprep.subr.mxu0 %v537
    %690 = vmatpush1.msra.mxu0 %v536
    %691 = vmatprep.subr.mxu0 %v539
    %692 = vmatpush1.msra.mxu0 %v538
    %693 = vmatprep.subr.mxu0 %v541
    %694 = vmatpush1.msra.mxu0 %v540
    %695 = vmatprep.subr.mxu0 %v543
    %696 = vmatpush1.msra.mxu0 %v542
    %697 = vmatprep.subr.mxu0 %v545
    %698 = vmatpush1.msra.mxu0 %v544
    %699 = vmatprep.subr.mxu0 %v547
    %700 = vmatpush1.msra.mxu0 %v546
    %701 = vmatprep.subr.mxu0 %v549
    %702 = vmatpush1.msra.mxu0 %v548
    %703 = vmatprep.subr.mxu0 %v551
    %704 = vmatpush1.msra.mxu0 %v550
    %705 = vmatprep.subr.mxu0 %v553
    %706 = vmatpush1.msra.mxu0 %v552
    %707 = vmatprep.subr.mxu0 %v555
    %708 = vmatpush1.msra.mxu0 %v554
    %709 = vmatprep.subr.mxu0 %v557
    %710 = vmatpush1.msra.mxu0 %v556
    %711 = vmatprep.subr.mxu0 %v559
    %712 = vmatpush1.msra.mxu0 %v558
    %713 = vmatprep.subr.mxu0 %v561
    %714 = vmatpush1.msra.mxu0 %v560
    %715 = vmatprep.subr.mxu0 %v563
    %716 = vmatpush1.msra.mxu0 %v562
    %717 = vmatprep.subr.mxu0 %v565
    %718 = vmatpush1.msra.mxu0 %v564
    %719 = vmatprep.subr.mxu0 %v567
    %720 = vmatpush1.msra.mxu0 %v566
    %721 = vmatprep.subr.mxu0 %v569
    %722 = vmatpush1.msra.mxu0 %v568
    %723 = vmatprep.subr.mxu0 %v571
    %724 = vmatpush1.msra.mxu0 %v570
    %725 = vmatprep.subr.mxu0 %v573
    %726 = vmatpush1.msra.mxu0 %v572
    %727 = vmatprep.subr.mxu0 %v575
    %728 = vmatpush1.msra.mxu0 %v574
    %729 = vmatprep.subr.mxu0 %v577
    %730 = vmatpush1.msra.mxu0 %v576
    %731 = vmatprep.subr.mxu0 %v579
    %732 = vmatpush1.msra.mxu0 %v578
    %733 = vmatprep.subr.mxu0 %v581
    %734 = vmatpush1.msra.mxu0 %v580
    %735 = vmatprep.mubr.f32.mxu0 %v449
    %736 = vmatmul.mubr.f32.gmra.mrb[0].mxu0 %v448
    %v737 = vpop.f32.mrb[0].mxu0
    %v738 = vadd.f32 %v661, %v737
    %v739 = vpop.f32.mrb[0].mxu0
    %v740 = vadd.f32 %v663, %v739
    %741 = vmatprep.mubr.f32.mxu0 %v453
    %742 = vmatmul.mubr.f32.gmra.mrb[0].mxu0 %v452
    %v743 = vpop.f32.mrb[0].mxu0
    %v744 = vadd.f32 %v667, %v743
    %v745 = vpop.f32.mrb[0].mxu0
    %v746 = vadd.f32 %v669, %v745
    %747 = vdwg.mxu0
    %v748 = vmax.f32 %v738, 0.0
    %v749 = vmax.f32 %v740, 0.0
    %v750 = vmax.f32 %v744, 0.0
    %v751 = vmax.f32 %v746, 0.0
    %v752 = vld [vmem:[%s7] sm:$0x3]
    %v753 = vld [vmem:[#allocation2] sm:$0x1]
    %755 = vset.pattern.permute.xlu0 0
    %756 = vperm.xlu0 %755, %v753
    %v757 = vpop.permute.xlu0 %756
    %v759 = vlaneseq
    %v760 = vshrl.u32 %v759, 7
    %v761 = vsub.s32 0, %v760
    %v762 = vrot.slane %v757, %v761
    %v764 = vlaneseq
    %v765 = vshrl.u32 %v764, 7
    %v766 = vsub.s32 0, %v765
    %v767 = vrot.slane %v752, %v766
    %v768 = vlaneseq
    %v769 = vshrl.u32 %v768, 7
    %v770 = vsub.s32 1, %v769
    %v771 = vrot.slane %v752, %v770
    %774 = vmatprep.subr.mxu0 %v749
    %775 = vmatpush1.xpose.msra.mxu0 %v748
    %776 = vmatprep.subr.mxu0 %v751
    %777 = vmatpush1.xpose.msra.mxu0 %v750
    %778 = vmatprep.subr.mxu0 0.0
    %779 = vmatpush1.xpose.msra.mxu0 0.0
    %780 = vmatprep.subr.mxu0 0.0
    %781 = vmatpush1.xpose.msra.mxu0 0.0
    %782 = vmatprep.subr.mxu0 0.0
    %783 = vmatpush1.xpose.msra.mxu0 0.0
    %784 = vmatprep.subr.mxu0 0.0
    %785 = vmatpush1.xpose.msra.mxu0 0.0
    %786 = vmatprep.subr.mxu0 0.0
    %787 = vmatpush1.xpose.msra.mxu0 0.0
    %788 = vmatprep.subr.mxu0 0.0
    %789 = vmatpush1.xpose.msra.mxu0 0.0
    %790 = vmatprep.subr.mxu0 0.0
    %791 = vmatpush1.xpose.msra.mxu0 0.0
    %792 = vmatprep.subr.mxu0 0.0
    %793 = vmatpush1.xpose.msra.mxu0 0.0
    %794 = vmatprep.subr.mxu0 0.0
    %795 = vmatpush1.xpose.msra.mxu0 0.0
    %796 = vmatprep.subr.mxu0 0.0
    %797 = vmatpush1.xpose.msra.mxu0 0.0
    %798 = vmatprep.subr.mxu0 0.0
    %799 = vmatpush1.xpose.msra.mxu0 0.0
    %800 = vmatprep.subr.mxu0 0.0
    %801 = vmatpush1.xpose.msra.mxu0 0.0
    %802 = vmatprep.subr.mxu0 0.0
    %803 = vmatpush1.xpose.msra.mxu0 0.0
    %804 = vmatprep.subr.mxu0 0.0
    %805 = vmatpush1.xpose.msra.mxu0 0.0
    %806 = vmatprep.subr.mxu0 0.0
    %807 = vmatpush1.xpose.msra.mxu0 0.0
    %808 = vmatprep.subr.mxu0 0.0
    %809 = vmatpush1.xpose.msra.mxu0 0.0
    %810 = vmatprep.subr.mxu0 0.0
    %811 = vmatpush1.xpose.msra.mxu0 0.0
    %812 = vmatprep.subr.mxu0 0.0
    %813 = vmatpush1.xpose.msra.mxu0 0.0
    %814 = vmatprep.subr.mxu0 0.0
    %815 = vmatpush1.xpose.msra.mxu0 0.0
    %816 = vmatprep.subr.mxu0 0.0
    %817 = vmatpush1.xpose.msra.mxu0 0.0
    %818 = vmatprep.subr.mxu0 0.0
    %819 = vmatpush1.xpose.msra.mxu0 0.0
    %820 = vmatprep.subr.mxu0 0.0
    %821 = vmatpush1.xpose.msra.mxu0 0.0
    %822 = vmatprep.subr.mxu0 0.0
    %823 = vmatpush1.xpose.msra.mxu0 0.0
    %824 = vmatprep.subr.mxu0 0.0
    %825 = vmatpush1.xpose.msra.mxu0 0.0
    %826 = vmatprep.subr.mxu0 0.0
    %827 = vmatpush1.xpose.msra.mxu0 0.0
    %828 = vmatprep.subr.mxu0 0.0
    %829 = vmatpush1.xpose.msra.mxu0 0.0
    %830 = vmatprep.subr.mxu0 0.0
    %831 = vmatpush1.xpose.msra.mxu0 0.0
    %832 = vmatprep.subr.mxu0 0.0
    %833 = vmatpush1.xpose.msra.mxu0 0.0
    %834 = vmatprep.subr.mxu0 0.0
    %835 = vmatpush1.xpose.msra.mxu0 0.0
    %836 = vmatprep.subr.mxu0 0.0
    %837 = vmatpush1.xpose.msra.mxu0 0.0
    %838 = vmatprep.mubr.f32.mxu0 %v771
    %839 = vmatmul.mubr.f32.gmra.mrb[0].mxu0 %v767
    %v840 = vpop.f32.mrb[0].mxu0
    %v841 = vadd.f32 %v762, %v840
    %v842 = vpop.f32.mrb[0].mxu0
    %843 = vdwg.mxu0
    %vm844 = vcmask 122880
    %845 = vst.msk [vmem:[#allocation8] sm:$0x1] %vm844, %v841
    // Predicated region
    $region46: #{tpu_custom_call.1} parent=1 // pred_check
      _
    $region47: #{tpu_custom_call.1} parent=1 // pred_check_branch
      %847 = sbr.rel (0) target = $region49
    $region48: #{tpu_custom_call.1} parent=1 // pred_region
      %s849 = ssub.s32 16, 16
      %850 = vsyncadd [#allocation5], %s849
      %s852 = sshll.u32 [#allocation8], 4
      %s853 = int_to_ptr.vmem [resolvable:$true] %s852
      %855 = dma.vmem_to_hbm [thread:$0]  %s853, 16, %s9, [#allocation5]
    $region49: #{tpu_custom_call.1} parent=1 // pred_fallthru
      _
    // Predicated region
    $region50: #{tpu_custom_call.1} parent=1 // pred_check
      _
    $region51: #{tpu_custom_call.1} parent=1 // pred_check_branch
      %857 = sbr.rel (0) target = $region53
    $region52: #{tpu_custom_call.1} parent=1 // pred_region
      %858 = dma.done [#allocation5], 16
    $region53: #{tpu_custom_call.1} parent=1 // pred_fallthru
      _
    %859 = vsyncpa [#allocation4], 1
    %860 = vsyncpa [#allocation7], 1
    %861 = vsyncpa [#allocation5], 1

</llo_original>
